<compile_context>
chip_gen: v5e
topology: v5e:2x2
jax: 0.10.0
libtpu: 0.0.40
codegen_flags: <defaults>
</compile_context>

<pallas_src>
import functools

import jax
import jax.numpy as jnp
from jax.experimental import pallas as pl
from jax.experimental.pallas import tpu as pltpu


def _bce_kernel(x_ref, y_ref, out_ref, *, total_k: int, block_k: int):
    # x_ref:   (block_n, block_k) feature-map tile (native dtype, VMEM)
    # y_ref:   (block_n, 1) per-sample labels      (VMEM, constant over K axis)
    # out_ref: (1, 1) per-row-block partial sum    (SMEM, resident over K axis)
    k = pl.program_id(1)

    @pl.when(k == 0)
    def _():
        out_ref[0, 0] = jnp.float32(0.0)

    x = x_ref[...].astype(jnp.float32)   # in-kernel upcast (bf16 -> f32 etc.)
    y = y_ref[...].astype(jnp.float32)   # (block_n, 1), broadcasts over K

    # TODO(synk): torch's runtime `assert torch.all(f_bfm >= 0)` has no clean
    # in-kernel equivalent; inputs are assumed to already lie in [0, 1].

    # Single-log BCE: exact for the hard {0,1} per-sample labels this module
    # broadcasts (y==1 -> log(x), y==0 -> log(1-x)); PyTorch BCELoss clamps
    # the log terms at -100.  The leading minus sign is applied in the wrapper.
    x_sel = jnp.where(y > 0.5, x, 1.0 - x)
    log_term = jnp.maximum(jnp.log(x_sel), -100.0)

    if total_k % block_k != 0:
        # Static branch: mask the padded tail of the last (partial) K tile.
        # (For full tiles the predicate is all-true; cost is a couple of VALU
        #  ops per vreg, well under the EUP/DMA bound.)
        col = jax.lax.broadcasted_iota(jnp.int32, log_term.shape, 1) + k * block_k
        log_term = jnp.where(col < total_k, log_term, 0.0)

    out_ref[0, 0] += jnp.sum(log_term)


def _choose_block_k(k_total: int, target: int = 4096) -> int:
    """Lane (K) tile width.

    Prefers a 128-multiple divisor of K in [512, target] (lane-dense, no mask);
    otherwise uses `target` with an in-kernel tail mask.  K <= target -> one
    full-width block (full array dim is always a legal block shape).
    """
    if k_total <= target:
        return k_total
    if k_total % 128 == 0:
        for bk in range(target - target % 128, 511, -128):
            if k_total % bk == 0:
                return bk
    return target  # partial last block, masked in-kernel


def _choose_block_n(n: int, max_bn: int = 64) -> int:
    """Sublane (N) tile height: multiple of 8 dividing N (full batch otherwise).

    Prefers >= 2 row blocks so the "parallel" axis can be core-sharded on v7x.
    """
    if n % 8 != 0:
        return n
    cap = min(max_bn, n // 2 if n >= 16 else n)
    cap -= cap % 8
    bn = max(cap, 8)
    while bn >= 8:
        if n % bn == 0:
            return bn
        bn -= 8
    return n


def pixel_binary_loss(binary_feature_map: jax.Array, labels: jax.Array) -> jax.Array:
    """Pallas equivalent of pixelBinaryLoss.forward.

    binary_feature_map: (N, C, W, H) float array with values in [0, 1]
    labels:             (N,) array of hard {0, 1} labels
    returns:            scalar f32 mean BCE loss
    """
    assert binary_feature_map.shape[0] == labels.shape[0]
    n, c, w, h = binary_feature_map.shape
    k_total = c * w * h

    # Glue only: reshape of contiguous NCHW is a view (no HBM copy); keep the
    # native dtype so the kernel DMAs half the bytes for bf16 inputs.
    x2d = binary_feature_map.reshape(n, k_total)
    y2d = labels.reshape(n, 1).astype(jnp.float32)

    block_n = _choose_block_n(n)
    block_k = _choose_block_k(k_total)
    grid_n = n // block_n
    grid_k = pl.cdiv(k_total, block_k)

    kernel = functools.partial(_bce_kernel, total_k=k_total, block_k=block_k)

    partial_sums = pl.pallas_call(
        kernel,
        grid=(grid_n, grid_k),
        in_specs=[
            # Feature-map tile: lane-dense, double-buffered across the grid.
            pl.BlockSpec((block_n, block_k), lambda i, k: (i, k)),
            # Labels: constant over the K axis -> DMA'd once per row tile.
            pl.BlockSpec((block_n, 1), lambda i, k: (i, 0)),
        ],
        # One scalar partial sum per row block; resident across the K axis.
        out_specs=pl.BlockSpec((1, 1), lambda i, k: (i, 0),
                               memory_space=pltpu.SMEM),
        out_shape=jax.ShapeDtypeStruct((grid_n, 1), jnp.float32),
        compiler_params=pltpu.CompilerParams(
            dimension_semantics=("parallel", "arbitrary"),
            vmem_limit_bytes=32 * 1024 * 1024,  # fits v5e/v6e/v7x scoped VMEM
        ),
    )(x2d, y2d)

    # Finalize once with the GLOBAL element count and the BCE minus sign
    # (per-row-block partial sums are just added here -> also correct when the
    # parallel axis is core-sharded).
    return jnp.sum(partial_sums) * (-1.0 / (n * k_total))


if __name__ == "__main__":
    key = jax.random.PRNGKey(0)
    k_x, k_y = jax.random.split(key)

    # Small shapes consistent with the module: N=2, C=4, W=H=16.
    # sigmoid keeps the "binary feature map" values strictly in (0, 1).
    bfm = jax.nn.sigmoid(jax.random.normal(k_x, (2, 4, 16, 16), dtype=jnp.float32))
    labels = jax.random.bernoulli(k_y, p=0.5, shape=(2,)).astype(jnp.float32)

    loss = pixel_binary_loss(bfm, labels)
    jax.block_until_ready(loss)

    # Pure-JAX reference check (same clamp-at--100 semantics as nn.BCELoss).
    y_full = jnp.broadcast_to(labels[:, None], (2, 4 * 16 * 16)).reshape(-1)
    x_full = bfm.reshape(-1)
    ref = -jnp.mean(
        y_full * jnp.maximum(jnp.log(x_full), -100.0)
        + (1.0 - y_full) * jnp.maximum(jnp.log(1.0 - x_full), -100.0)
    )
    assert jnp.allclose(loss, ref, atol=1e-5, rtol=1e-5), (loss, ref)

    print("KERNEL_OK")
</pallas_src>

<mosaic_0001>
module attributes {stable_mosaic.version = 11 : i64} {
  func.func @_bce_kernel(%arg0: i32, %arg1: i32, %arg2: memref<2x1024xf32, #tpu.memory_space<vmem>>, %arg3: memref<2x1xf32, #tpu.memory_space<vmem>>, %arg4: memref<1x1xf32, #tpu.memory_space<smem>>) attributes {dimension_semantics = [#tpu.dimension_semantics<parallel>, #tpu.dimension_semantics<arbitrary>], iteration_bounds = array<i64: 1, 1>, scalar_prefetch = 0 : i64, scratch_operands = 0 : i64, tpu.core_type = #tpu.core_type<tc>, window_params = [{transform_indices = @transform_0, window_bounds = array<i64: 2, 1024>}, {transform_indices = @transform_1, window_bounds = array<i64: 2, 1>}, {transform_indices = @transform_2, window_bounds = array<i64: 1, 1>}]} {
    %c0_i32 = arith.constant 0 : i32
    %0 = arith.cmpi eq, %arg1, %c0_i32 : i32
    %1 = arith.extui %0 : i1 to i32
    %c0_i32_0 = arith.constant 0 : i32
    %2 = arith.cmpi ne, %1, %c0_i32_0 : i32
    scf.if %2 {
      %cst_11 = arith.constant 0.000000e+00 : f32
      %c0_12 = arith.constant 0 : index
      %c0_13 = arith.constant 0 : index
      %22 = memref.load %arg4[%c0_12, %c0_13] : memref<1x1xf32, #tpu.memory_space<smem>>
      memref.store %cst_11, %arg4[%c0_12, %c0_13] : memref<1x1xf32, #tpu.memory_space<smem>>
    } else {
    }
    %c0 = arith.constant 0 : index
    %c0_1 = arith.constant 0 : index
    %3 = vector.load %arg2[%c0, %c0_1] : memref<2x1024xf32, #tpu.memory_space<vmem>>, vector<2x1024xf32>
    %c0_2 = arith.constant 0 : index
    %c0_3 = arith.constant 0 : index
    %4 = vector.load %arg3[%c0_2, %c0_3] : memref<2x1xf32, #tpu.memory_space<vmem>>, vector<2x1xf32>
    %cst = arith.constant 5.000000e-01 : f32
    %5 = vector.broadcast %cst : f32 to vector<2x1xf32>
    %6 = arith.cmpf ogt, %4, %5 : vector<2x1xf32>
    %cst_4 = arith.constant 1.000000e+00 : f32
    %7 = vector.broadcast %cst_4 : f32 to vector<2x1024xf32>
    %8 = arith.subf %7, %3 : vector<2x1024xf32>
    %9 = vector.shape_cast %6 : vector<2x1xi1> to vector<2x1xi1>
    %10 = vector.broadcast %9 : vector<2x1xi1> to vector<2x1024xi1>
    %11 = arith.select %10, %3, %8 : vector<2x1024xi1>, vector<2x1024xf32>
    %12 = math.log %11 : vector<2x1024xf32>
    %cst_5 = arith.constant -1.000000e+02 : f32
    %13 = vector.broadcast %cst_5 : f32 to vector<2x1024xf32>
    %14 = arith.maximumf %12, %13 : vector<2x1024xf32>
    %c0_6 = arith.constant 0 : index
    %c0_7 = arith.constant 0 : index
    %15 = memref.load %arg4[%c0_6, %c0_7] : memref<1x1xf32, #tpu.memory_space<smem>>
    %16 = vector.shape_cast %14 : vector<2x1024xf32> to vector<1x2x1024xf32>
    %cst_8 = arith.constant dense<0.000000e+00> : vector<1xf32>
    %17 = vector.multi_reduction <add>, %16, %cst_8 [1, 2] : vector<1x2x1024xf32> to vector<1xf32>
    %18 = vector.shape_cast %17 : vector<1xf32> to vector<1x1x1xf32>
    %19 = vector.extract %18[0, 0, 0] : f32 from vector<1x1x1xf32>
    %20 = arith.addf %15, %19 : f32
    %c0_9 = arith.constant 0 : index
    %c0_10 = arith.constant 0 : index
    %21 = memref.load %arg4[%c0_9, %c0_10] : memref<1x1xf32, #tpu.memory_space<smem>>
    memref.store %20, %arg4[%c0_9, %c0_10] : memref<1x1xf32, #tpu.memory_space<smem>>
    return
  }
  func.func @transform_0(%arg0: i32, %arg1: i32) -> (i32, i32) {
    %c0_i32 = arith.constant 0 : i32
    return %arg0, %arg1 : i32, i32
  }
  func.func @transform_1(%arg0: i32, %arg1: i32) -> (i32, i32) {
    %c0_i32 = arith.constant 0 : i32
    %c0_i32_0 = arith.constant 0 : i32
    return %arg0, %c0_i32 : i32, i32
  }
  func.func @transform_2(%arg0: i32, %arg1: i32) -> (i32, i32) {
    %c0_i32 = arith.constant 0 : i32
    %c0_i32_0 = arith.constant 0 : i32
    return %arg0, %c0_i32 : i32, i32
  }
}

</mosaic_0001>

<llo_original>
// kernel: tpu_custom_call.1
$region0: #{tpu_custom_call.1}
  #allocation0 [shape = 'u32[]', space=smem, size = 0x4, offset = 0x4, fixed_abs, tag = 'smem constant byte address 0x4 - core index']
  #allocation1 [shape = 'u32[72,128]{1,0:T(1,128)}', space=vmem, size = 0x9000, scoped, tag = 'internal scratch']
  %s0 = inlined_call_operand.hbm [shape: f32[2,1024], index: 0, kind: input, shape index: {}]
  %s1 = inlined_call_operand.vmem [shape: f32[2,1], index: 1, kind: input, shape index: {}]
  %s2 = inlined_call_operand.hbm [shape: f32[1,1], index: 2, kind: output, shape index: {}]
  %s3 = sld [smem:[#allocation0]]
  $region26: #{tpu_custom_call.1} parent=0
    _
  %s5 = ssub.s32 1, %s3
  %s6 = scalar_select 0, %s5, %s3
  $region1: #{tpu_custom_call.1} parent=0
    #allocation2 [shape = 'u8[8192]{0}', space=vmem, size = 0x2000, scoped, tag = 'input window, operand 0, single buffered']
    #allocation3 [shape = 's32[1]{0}', space=sflag, size = 0x4, scoped, tag = 'scoped memory for tpu_custom_call.1']
    #allocation4 [shape = 's32[1]{0}', space=sflag, size = 0x4, scoped, tag = 'scoped memory for tpu_custom_call.1']
    #allocation5 [shape = 'u8[512]{0}', space=smem, size = 0x200, scoped, tag = 'output window, operand 0, single buffered']
    %7 = vsyncpa [#allocation3], 0
    %8 = vsyncpa [#allocation4], 0
    // Predicated region
    $region2: #{tpu_custom_call.1} parent=1 // pred_check
      _
    $region3: #{tpu_custom_call.1} parent=1 // pred_check_branch
      %10 = sbr.rel (0) target = $region5
    $region4: #{tpu_custom_call.1} parent=1 // pred_region
      %12 = vsyncadd [#allocation3], 0
      %s14 = sshll.u32 %s0, 4
      %s15 = int_to_ptr.hbm [resolvable:$true] %s14
      %s16 = sshll.u32 [#allocation2], 4
      %s17 = int_to_ptr.vmem [resolvable:$true] %s16
      %19 = dma.hbm_to_vmem [thread:$0]  %s15, 256, %s17, [#allocation3]
    $region5: #{tpu_custom_call.1} parent=1 // pred_fallthru
      _
    // Predicated region
    $region6: #{tpu_custom_call.1} parent=1 // pred_check
      _
    $region7: #{tpu_custom_call.1} parent=1 // pred_check_branch
      %21 = sbr.rel (0) target = $region9
    $region8: #{tpu_custom_call.1} parent=1 // pred_region
      _
    $region9: #{tpu_custom_call.1} parent=1 // pred_fallthru
      _
    // Predicated region
    $region10: #{tpu_custom_call.1} parent=1 // pred_check
      _
    $region11: #{tpu_custom_call.1} parent=1 // pred_check_branch
      %23 = sbr.rel (0) target = $region13
    $region12: #{tpu_custom_call.1} parent=1 // pred_region
      %25 = dma.done [#allocation3], 256
    $region13: #{tpu_custom_call.1} parent=1 // pred_fallthru
      _
    %p26 = scmp.eq.s32.totalorder 0, 0
    // Predicated region
    $region14: #{tpu_custom_call.1} parent=1 // pred_check
      %p27 = pneg %p26
    $region15: #{tpu_custom_call.1} parent=1 // pred_check_branch
      %29 = sbr.rel (%p27) target = $region17
    $region16: #{tpu_custom_call.1} parent=1 // pred_region
      %s30 = scalar_lea.smem [#allocation5], 0
      %31 = sst [smem:[%s30]] 0.0
    $region17: #{tpu_custom_call.1} parent=1 // pred_fallthru
      _
    %v32 = vld [vmem:[#allocation2] sm:$0xff]
    %v33 = vld [vmem:[#allocation2 + $0x8] sm:$0xff]
    %v34 = vld [vmem:[%s1] sm:$0x3]
    %vm35 = vcmp.gt.f32.partialorder %v34, 0.5
    %v36 = vsub.f32 1.0, %v32
    %v37 = vsub.f32 1.0, %v33
    %v38 = vsel %vm35, 1, 0
    %39 = vset.pattern.permute.xlu0 0
    %40 = vperm.xlu0 %39, %v38
    %v41 = vpop.permute.xlu0 %40
    %vm42 = vcmp.eq.s32.totalorder %v41, 1
    %45 = vst [vmem:[#allocation1] ss:$4 sm:$0xff] %v32
    %s46 = scalar_lea.vmem [#allocation1], 32
    %47 = vst [vmem:[%s46] ss:$4 sm:$0xff] %v33
    %v48 = vld.sshfl [vmem:[#allocation1] sm:$0xff pattern:$0x73625140]
    %v49 = vld.sshfl [vmem:[#allocation1 + $0x8] sm:$0xff pattern:$0x73625140]
    %v50 = vld.sshfl [vmem:[#allocation1 + $0x10] sm:$0xff pattern:$0x73625140]
    %v51 = vld.sshfl [vmem:[#allocation1 + $0x18] sm:$0xff pattern:$0x73625140]
    %v52 = vld.sshfl [vmem:[#allocation1 + $0x20] sm:$0xff pattern:$0x73625140]
    %v53 = vld.sshfl [vmem:[#allocation1 + $0x28] sm:$0xff pattern:$0x73625140]
    %v54 = vld.sshfl [vmem:[#allocation1 + $0x30] sm:$0xff pattern:$0x73625140]
    %v55 = vld.sshfl [vmem:[#allocation1 + $0x38] sm:$0xff pattern:$0x73625140]
    %66 = vst [vmem:[#allocation1] ss:$4 sm:$0xff] %v36
    %s67 = scalar_lea.vmem [#allocation1], 32
    %68 = vst [vmem:[%s67] ss:$4 sm:$0xff] %v37
    %v69 = vld.sshfl [vmem:[#allocation1] sm:$0xff pattern:$0x73625140]
    %v70 = vld.sshfl [vmem:[#allocation1 + $0x8] sm:$0xff pattern:$0x73625140]
    %v71 = vld.sshfl [vmem:[#allocation1 + $0x10] sm:$0xff pattern:$0x73625140]
    %v72 = vld.sshfl [vmem:[#allocation1 + $0x18] sm:$0xff pattern:$0x73625140]
    %v73 = vld.sshfl [vmem:[#allocation1 + $0x20] sm:$0xff pattern:$0x73625140]
    %v74 = vld.sshfl [vmem:[#allocation1 + $0x28] sm:$0xff pattern:$0x73625140]
    %v75 = vld.sshfl [vmem:[#allocation1 + $0x30] sm:$0xff pattern:$0x73625140]
    %v76 = vld.sshfl [vmem:[#allocation1 + $0x38] sm:$0xff pattern:$0x73625140]
    %v85 = vsel %vm42, %v48, %v69
    %v86 = vsel %vm42, %v49, %v70
    %v87 = vsel %vm42, %v50, %v71
    %v88 = vsel %vm42, %v51, %v72
    %v89 = vsel %vm42, %v52, %v73
    %v90 = vsel %vm42, %v53, %v74
    %v91 = vsel %vm42, %v54, %v75
    %v92 = vsel %vm42, %v55, %v76
    %v93 = vlog2.pop %v85
    %v94 = vmul.f32 %v93, 0.6931472
    %v95 = vlog2.pop %v86
    %v96 = vmul.f32 %v95, 0.6931472
    %v97 = vlog2.pop %v87
    %v98 = vmul.f32 %v97, 0.6931472
    %v99 = vlog2.pop %v88
    %v100 = vmul.f32 %v99, 0.6931472
    %v101 = vlog2.pop %v89
    %v102 = vmul.f32 %v101, 0.6931472
    %v103 = vlog2.pop %v90
    %v104 = vmul.f32 %v103, 0.6931472
    %v105 = vlog2.pop %v91
    %v106 = vmul.f32 %v105, 0.6931472
    %v107 = vlog2.pop %v92
    %v108 = vmul.f32 %v107, 0.6931472
    %v109 = vmax.f32 %v94, -100.0
    %v110 = vmax.f32 %v96, -100.0
    %v111 = vmax.f32 %v98, -100.0
    %v112 = vmax.f32 %v100, -100.0
    %v113 = vmax.f32 %v102, -100.0
    %v114 = vmax.f32 %v104, -100.0
    %v115 = vmax.f32 %v106, -100.0
    %v116 = vmax.f32 %v108, -100.0
    %s117 = sld [smem:[#allocation5]]
    %vm118 = vcmask 1041408
    %v119 = vsel %vm118, %v109, 0.0
    %v120 = vsel %vm118, %v110, 0.0
    %v121 = vadd.f32 %v119, %v120
    %v122 = vsel %vm118, %v111, 0.0
    %v123 = vadd.f32 %v121, %v122
    %v124 = vsel %vm118, %v112, 0.0
    %v125 = vadd.f32 %v123, %v124
    %v126 = vsel %vm118, %v113, 0.0
    %v127 = vadd.f32 %v125, %v126
    %v128 = vsel %vm118, %v114, 0.0
    %v129 = vadd.f32 %v127, %v128
    %v130 = vsel %vm118, %v115, 0.0
    %v131 = vadd.f32 %v129, %v130
    %v132 = vsel %vm118, %v116, 0.0
    %v133 = vadd.f32 %v131, %v132
    %134 = vadd.xlane.f32.xlu0 %v133
    %v135 = vpop.xlane.xlu0 %134
    %v136 = vrot.slane %v135, 4
    %v137 = vadd.f32 %v135, %v136
    %v138 = vrot.slane %v137, 2
    %v139 = vadd.f32 %v137, %v138
    %v140 = vrot.slane %v139, 1
    %v141 = vadd.f32 %v139, %v140
    %s142 = vtos %v141
    %s143 = sadd.f32 %s117, %s142
    %s144 = scalar_lea.smem [#allocation5], 0
    %145 = sst [smem:[%s144]] %s143
    // Predicated region
    $region18: #{tpu_custom_call.1} parent=1 // pred_check
      _
    $region19: #{tpu_custom_call.1} parent=1 // pred_check_branch
      %147 = sbr.rel (0) target = $region21
    $region20: #{tpu_custom_call.1} parent=1 // pred_region
      %149 = vsyncadd [#allocation4], 0
      %s151 = sshll.u32 %s2, 4
      %s152 = int_to_ptr.hbm [resolvable:$true] %s151
      %154 = dma.smem_to_hbm [#allocation5], 16, %s152, [#allocation4]
    $region21: #{tpu_custom_call.1} parent=1 // pred_fallthru
      _
    // Predicated region
    $region22: #{tpu_custom_call.1} parent=1 // pred_check
      _
    $region23: #{tpu_custom_call.1} parent=1 // pred_check_branch
      %156 = sbr.rel (0) target = $region25
    $region24: #{tpu_custom_call.1} parent=1 // pred_region
      %158 = dma.done [#allocation4], 16
    $region25: #{tpu_custom_call.1} parent=1 // pred_fallthru
      _
    %159 = sfence
    %160 = vsyncpa [#allocation3], 1
    %161 = vsyncpa [#allocation4], 1

</llo_original>
